<compile_context>
chip_gen: v6e
topology: v6e:2x2x1
jax: 0.10.0
libtpu: 0.0.40
codegen_flags: <defaults>
</compile_context>

<pallas_src>
import math

import jax
import jax.numpy as jnp
from jax.experimental import pallas as pl
from jax.experimental.pallas import tpu as pltpu


def _round_up(a, b):
    return (a + b - 1) // b * b


def _gelu_exact(v):
    """PyTorch nn.GELU default: 0.5*v*(1 + erf(v/sqrt(2))).

    erf via Abramowitz & Stegun 7.1.26 (abs err ~1.5e-7).  The sign select is
    folded away using v*sign(v) == |v|, and the 1/(1+p|u|) term goes through
    the otherwise-idle EUP via pl.reciprocal(approx=True) (adds ~1e-4 abs
    error to the activation, well within test tolerance).
    """
    a1, a2, a3, a4, a5 = (0.254829592, -0.284496736, 1.421413741,
                          -1.453152027, 1.061405429)
    p_over_sqrt2 = 0.3275911 / math.sqrt(2.0)
    av = jnp.abs(v)
    t = pl.reciprocal(1.0 + p_over_sqrt2 * av, approx=True)
    poly = ((((a5 * t + a4) * t + a3) * t + a2) * t + a1) * t
    return 0.5 * v + 0.5 * av * (1.0 - poly * jnp.exp(-0.5 * v * v))


def _mlp_kernel(x_ref, w1_ref, b1_ref, w2_ref, b2_ref, o_ref, acc_ref):
    # x_ref  : (bm, C_pad)       row tile of tokens, resident across hidden axis
    # w1_ref : (C_pad, tk)       fc1 weight, hidden chunk j
    # b1_ref : (1, tk)           fc1 bias,   hidden chunk j (f32)
    # w2_ref : (tk, Cout_pad)    fc2 weight, hidden chunk j
    # b2_ref : (1, Cout_pad)     fc2 bias (f32), grid-invariant
    # o_ref  : (bm, Cout_pad)    output row tile (written on last chunk)
    # acc_ref: (bm, Cout_pad)    f32 accumulator scratch
    j = pl.program_id(1)

    @pl.when(j == 0)
    def _():
        acc_ref[...] = jnp.zeros_like(acc_ref)

    h = jnp.dot(x_ref[...], w1_ref[...], preferred_element_type=jnp.float32)
    h = _gelu_exact(h + b1_ref[...])
    acc_ref[...] += jnp.dot(h.astype(w2_ref.dtype), w2_ref[...],
                            preferred_element_type=jnp.float32)

    @pl.when(j == pl.num_programs(1) - 1)
    def _():
        o_ref[...] = (acc_ref[...] + b2_ref[...]).astype(o_ref.dtype)


def prepare_mlp_params(params, *, compute_dtype=jnp.float32, hidden_block=512):
    """Pad + cast the Linear weights ONCE (do not redo this per forward call).

    params: w1_t (C, hidden), b1 (hidden,), w2_t (hidden, Cout), b2 (Cout,)
            -- PyTorch Linear weights pre-transposed to (in, out).
    """
    C, hidden = params['w1_t'].shape
    hidden2, Cout = params['w2_t'].shape
    assert hidden == hidden2
    C_pad = _round_up(C, 128)
    Cout_pad = _round_up(Cout, 128)
    tk = _round_up(min(hidden_block, _round_up(hidden, 128)), 128)
    hidden_pad = _round_up(hidden, tk)

    w1 = jnp.pad(params['w1_t'].astype(jnp.float32),
                 ((0, C_pad - C), (0, hidden_pad - hidden))).astype(compute_dtype)
    b1 = jnp.pad(params['b1'].astype(jnp.float32),
                 (0, hidden_pad - hidden)).reshape(1, hidden_pad)
    w2 = jnp.pad(params['w2_t'].astype(jnp.float32),
                 ((0, hidden_pad - hidden), (0, Cout_pad - Cout))).astype(compute_dtype)
    b2 = jnp.pad(params['b2'].astype(jnp.float32),
                 (0, Cout_pad - Cout)).reshape(1, Cout_pad)
    return dict(w1=w1, b1=b1, w2=w2, b2=b2,
                C=C, hidden=hidden, Cout=Cout,
                C_pad=C_pad, hidden_pad=hidden_pad, Cout_pad=Cout_pad,
                tk=tk, compute_dtype=compute_dtype)


def _choose_bm(M_total, block_rows):
    want = min(_round_up(block_rows, 16), _round_up(M_total, 16))
    if M_total > 16:
        # At least two row tiles -> megacore sharding + DMA/compute pipelining.
        want = min(want, _round_up((M_total + 1) // 2, 16))
    bm = want
    # Keep zero-row padding waste under bm/2 (odd token counts).
    while bm > 16 and 2 * (_round_up(M_total, bm) - M_total) >= bm:
        bm -= 16
    return max(bm, 16)


def mlp_forward(x, params, H=None, W=None, *, block_rows=512,
                compute_dtype=jnp.float32, hidden_block=512, out_dtype=None):
    """Pallas forward of Mlp: fc2(GELU(fc1(x))).

    drop=0.0 and with_dwconv=False (module defaults) are identities; H/W are
    accepted only for signature parity with the PyTorch module.
    """
    # TODO(synk): DWConv (with_dwconv=True) depthwise 3x3 branch not
    # implemented; module default with_dwconv=False so it never runs here.
    if 'w1' not in params:  # raw (unpadded) params -> prepare on the fly
        params = prepare_mlp_params(params, compute_dtype=compute_dtype,
                                    hidden_block=hidden_block)
    cdt = params['compute_dtype']
    C, Cout = params['C'], params['Cout']
    C_pad, hidden_pad, Cout_pad, tk = (params['C_pad'], params['hidden_pad'],
                                       params['Cout_pad'], params['tk'])

    B, N, Cx = x.shape
    assert Cx == C
    out_dtype = out_dtype or x.dtype

    M_total = B * N
    bm = _choose_bm(M_total, block_rows)
    M_pad = _round_up(M_total, bm)

    x2d = x.reshape(M_total, C)
    if (M_pad, C_pad) != (M_total, C):
        x2d = jnp.pad(x2d, ((0, M_pad - M_total), (0, C_pad - C)))
    x2d = x2d.astype(cdt)

    n_rows = M_pad // bm
    n_k = hidden_pad // tk

    # VMEM budget: double-buffered x / w1 / b1 / w2 / b2 + out tiles, f32 acc.
    isz = jnp.dtype(cdt).itemsize
    vmem_bytes = (2 * (bm * C_pad + C_pad * tk + tk * Cout_pad) * isz
                  + 2 * (tk + Cout_pad) * 4
                  + 2 * bm * Cout_pad * jnp.dtype(out_dtype).itemsize
                  + bm * Cout_pad * 4
                  + (4 << 20))                      # headroom
    vmem_limit = int(min(max(vmem_bytes, 16 << 20), 64 << 20))

    out = pl.pallas_call(
        _mlp_kernel,
        out_shape=jax.ShapeDtypeStruct((M_pad, Cout_pad), out_dtype),
        grid_spec=pltpu.PrefetchScalarGridSpec(
            num_scalar_prefetch=0,
            grid=(n_rows, n_k),
            in_specs=[
                pl.BlockSpec((bm, C_pad), lambda i, j: (i, 0)),      # x rows
                pl.BlockSpec((C_pad, tk), lambda i, j: (0, j)),      # w1 chunk
                pl.BlockSpec((1, tk), lambda i, j: (0, j)),          # b1 chunk
                pl.BlockSpec((tk, Cout_pad), lambda i, j: (j, 0)),   # w2 chunk
                pl.BlockSpec((1, Cout_pad), lambda i, j: (0, 0)),    # b2
            ],
            out_specs=pl.BlockSpec((bm, Cout_pad), lambda i, j: (i, 0)),
            scratch_shapes=[pltpu.VMEM((bm, Cout_pad), jnp.float32)],
        ),
        compiler_params=pltpu.CompilerParams(
            dimension_semantics=("parallel", "arbitrary"),
            vmem_limit_bytes=vmem_limit,
        ),
    )(x2d, params['w1'], params['b1'], params['w2'], params['b2'])

    if (M_pad, Cout_pad) != (M_total, Cout):
        out = out[:M_total, :Cout]
    return out.reshape(B, N, Cout)


def _ref_mlp(x, params):
    # Pure-JAX reference (exact erf GELU), f32, high-precision matmuls.
    B, N, C = x.shape
    hp = jax.lax.Precision.HIGHEST
    h = jnp.dot(x.reshape(B * N, C), params['w1_t'], precision=hp) + params['b1']
    h = 0.5 * h * (1.0 + jax.scipy.special.erf(h / math.sqrt(2.0)))
    y = jnp.dot(h, params['w2_t'], precision=hp) + params['b2']
    return y.reshape(B, N, -1)


if __name__ == "__main__":
    key = jax.random.PRNGKey(0)
    B, Hs, Ws, C = 2, 8, 8, 32
    N = Hs * Ws
    hidden = int(C * 4.0)

    k_x, k_w1, k_b1, k_w2, k_b2 = jax.random.split(key, 5)
    x = jax.random.normal(k_x, (B, N, C), jnp.float32)
    raw = dict(
        w1_t=0.1 * jax.random.normal(k_w1, (C, hidden), jnp.float32),
        b1=0.02 * jax.random.normal(k_b1, (hidden,), jnp.float32),
        w2_t=0.1 * jax.random.normal(k_w2, (hidden, C), jnp.float32),
        b2=0.02 * jax.random.normal(k_b2, (C,), jnp.float32),
    )

    y_ref = _ref_mlp(x, raw)

    # f32 operand path. Tolerance covers TPU MXU pass-precision differences
    # between the in-kernel dots and the HIGHEST-precision reference.
    p32 = prepare_mlp_params(raw, compute_dtype=jnp.float32)
    y32 = mlp_forward(x, p32, Hs, Ws)
    jax.block_until_ready(y32)
    assert y32.shape == (B, N, C)
    assert bool(jnp.all(jnp.isfinite(y32)))
    assert bool(jnp.allclose(y32, y_ref, atol=1e-2, rtol=1e-2)), \
        float(jnp.max(jnp.abs(y32 - y_ref)))

    # bf16 operand path (recommended on v5e/v6e/v7x): f32 accumulation,
    # looser tolerance vs the f32 reference.
    pbf = prepare_mlp_params(raw, compute_dtype=jnp.bfloat16)
    ybf = mlp_forward(x, pbf, Hs, Ws)
    jax.block_until_ready(ybf)
    assert ybf.shape == (B, N, C)
    assert bool(jnp.all(jnp.isfinite(ybf)))
    assert bool(jnp.allclose(ybf.astype(jnp.float32), y_ref,
                             atol=5e-2, rtol=5e-2)), \
        float(jnp.max(jnp.abs(ybf.astype(jnp.float32) - y_ref)))

    print("KERNEL_OK")
</pallas_src>

<mosaic_0001>
module attributes {stable_mosaic.version = 11 : i64} {
  func.func @_mlp_kernel(%arg0: i32, %arg1: i32, %arg2: memref<64x128xf32, #tpu.memory_space<vmem>>, %arg3: memref<128x128xf32, #tpu.memory_space<vmem>>, %arg4: memref<1x128xf32, #tpu.memory_space<vmem>>, %arg5: memref<128x128xf32, #tpu.memory_space<vmem>>, %arg6: memref<1x128xf32, #tpu.memory_space<vmem>>, %arg7: memref<64x128xf32, #tpu.memory_space<vmem>>, %arg8: memref<64x128xf32, #tpu.memory_space<vmem>>) attributes {dimension_semantics = [#tpu.dimension_semantics<parallel>, #tpu.dimension_semantics<arbitrary>], iteration_bounds = array<i64: 2, 1>, scalar_prefetch = 0 : i64, scratch_operands = 1 : i64, tpu.core_type = #tpu.core_type<tc>, window_params = [{transform_indices = @transform_0, window_bounds = array<i64: 64, 128>}, {transform_indices = @transform_1, window_bounds = array<i64: 128, 128>}, {transform_indices = @transform_2, window_bounds = array<i64: 1, 128>}, {transform_indices = @transform_3, window_bounds = array<i64: 128, 128>}, {pipeline_mode = #tpu.pipeline_mode<synchronous>, transform_indices = @transform_4, window_bounds = array<i64: 1, 128>}, {transform_indices = @transform_5, window_bounds = array<i64: 64, 128>}]} {
    %c0_i32 = arith.constant 0 : i32
    %0 = arith.cmpi eq, %arg1, %c0_i32 : i32
    %1 = arith.extui %0 : i1 to i32
    %c0_i32_0 = arith.constant 0 : i32
    %2 = arith.cmpi ne, %1, %c0_i32_0 : i32
    scf.if %2 {
      %cst_26 = arith.constant 0.000000e+00 : f32
      %50 = vector.broadcast %cst_26 : f32 to vector<64x128xf32>
      %c0_27 = arith.constant 0 : index
      %c0_28 = arith.constant 0 : index
      %51 = vector.load %arg8[%c0_27, %c0_28] : memref<64x128xf32, #tpu.memory_space<vmem>>, vector<64x128xf32>
      tpu.vector_store %arg8[%c0_27, %c0_28], %50 {strides = array<i32>} : memref<64x128xf32, #tpu.memory_space<vmem>>, vector<64x128xf32>,
    } else {
    }
    %c0 = arith.constant 0 : index
    %c0_1 = arith.constant 0 : index
    %3 = vector.load %arg2[%c0, %c0_1] : memref<64x128xf32, #tpu.memory_space<vmem>>, vector<64x128xf32>
    %c0_2 = arith.constant 0 : index
    %c0_3 = arith.constant 0 : index
    %4 = vector.load %arg3[%c0_2, %c0_3] : memref<128x128xf32, #tpu.memory_space<vmem>>, vector<128x128xf32>
    %cst = arith.constant dense<0.000000e+00> : vector<64x128xf32>
    %5 = tpu.matmul %3, %4, %cst {dimension_numbers = #tpu.dot_dimension_numbers<[1], [0], [0], [1], [0, 0, 1, 1], [], []>} : vector<64x128xf32>, vector<128x128xf32>, vector<64x128xf32> -> vector<64x128xf32>
    %c0_4 = arith.constant 0 : index
    %c0_5 = arith.constant 0 : index
    %6 = vector.load %arg4[%c0_4, %c0_5] : memref<1x128xf32, #tpu.memory_space<vmem>>, vector<1x128xf32>
    %7 = vector.broadcast %6 : vector<1x128xf32> to vector<64x128xf32>
    %8 = arith.addf %5, %7 : vector<64x128xf32>
    %9 = math.absf %8 : vector<64x128xf32>
    %cst_6 = arith.constant 0.231641889 : f32
    %10 = vector.broadcast %cst_6 : f32 to vector<64x128xf32>
    %11 = arith.mulf %10, %9 : vector<64x128xf32>
    %cst_7 = arith.constant 1.000000e+00 : f32
    %12 = vector.broadcast %cst_7 : f32 to vector<64x128xf32>
    %13 = arith.addf %12, %11 : vector<64x128xf32>
    %14 = tpu.reciprocal %13 {approx = true} : vector<64x128xf32> -> vector<64x128xf32>
    %cst_8 = arith.constant 1.06140542 : f32
    %15 = vector.broadcast %cst_8 : f32 to vector<64x128xf32>
    %16 = arith.mulf %15, %14 : vector<64x128xf32>
    %cst_9 = arith.constant -1.45315206 : f32
    %17 = vector.broadcast %cst_9 : f32 to vector<64x128xf32>
    %18 = arith.addf %16, %17 : vector<64x128xf32>
    %19 = arith.mulf %18, %14 : vector<64x128xf32>
    %cst_10 = arith.constant 1.42141378 : f32
    %20 = vector.broadcast %cst_10 : f32 to vector<64x128xf32>
    %21 = arith.addf %19, %20 : vector<64x128xf32>
    %22 = arith.mulf %21, %14 : vector<64x128xf32>
    %cst_11 = arith.constant -0.284496725 : f32
    %23 = vector.broadcast %cst_11 : f32 to vector<64x128xf32>
    %24 = arith.addf %22, %23 : vector<64x128xf32>
    %25 = arith.mulf %24, %14 : vector<64x128xf32>
    %cst_12 = arith.constant 0.254829586 : f32
    %26 = vector.broadcast %cst_12 : f32 to vector<64x128xf32>
    %27 = arith.addf %25, %26 : vector<64x128xf32>
    %28 = arith.mulf %27, %14 : vector<64x128xf32>
    %cst_13 = arith.constant 5.000000e-01 : f32
    %29 = vector.broadcast %cst_13 : f32 to vector<64x128xf32>
    %30 = arith.mulf %29, %8 : vector<64x128xf32>
    %cst_14 = arith.constant 5.000000e-01 : f32
    %31 = vector.broadcast %cst_14 : f32 to vector<64x128xf32>
    %32 = arith.mulf %31, %9 : vector<64x128xf32>
    %cst_15 = arith.constant -5.000000e-01 : f32
    %33 = vector.broadcast %cst_15 : f32 to vector<64x128xf32>
    %34 = arith.mulf %33, %8 : vector<64x128xf32>
    %35 = arith.mulf %34, %8 : vector<64x128xf32>
    %36 = math.exp %35 : vector<64x128xf32>
    %37 = arith.mulf %28, %36 : vector<64x128xf32>
    %cst_16 = arith.constant 1.000000e+00 : f32
    %38 = vector.broadcast %cst_16 : f32 to vector<64x128xf32>
    %39 = arith.subf %38, %37 : vector<64x128xf32>
    %40 = arith.mulf %32, %39 : vector<64x128xf32>
    %41 = arith.addf %30, %40 : vector<64x128xf32>
    %c0_17 = arith.constant 0 : index
    %c0_18 = arith.constant 0 : index
    %42 = vector.load %arg8[%c0_17, %c0_18] : memref<64x128xf32, #tpu.memory_space<vmem>>, vector<64x128xf32>
    %c0_19 = arith.constant 0 : index
    %c0_20 = arith.constant 0 : index
    %43 = vector.load %arg5[%c0_19, %c0_20] : memref<128x128xf32, #tpu.memory_space<vmem>>, vector<128x128xf32>
    %cst_21 = arith.constant dense<0.000000e+00> : vector<64x128xf32>
    %44 = tpu.matmul %41, %43, %cst_21 {dimension_numbers = #tpu.dot_dimension_numbers<[1], [0], [0], [1], [0, 0, 1, 1], [], []>} : vector<64x128xf32>, vector<128x128xf32>, vector<64x128xf32> -> vector<64x128xf32>
    %45 = arith.addf %42, %44 : vector<64x128xf32>
    %c0_22 = arith.constant 0 : index
    %c0_23 = arith.constant 0 : index
    %46 = vector.load %arg8[%c0_22, %c0_23] : memref<64x128xf32, #tpu.memory_space<vmem>>, vector<64x128xf32>
    tpu.vector_store %arg8[%c0_22, %c0_23], %45 {strides = array<i32>} : memref<64x128xf32, #tpu.memory_space<vmem>>, vector<64x128xf32>,
    %c0_i32_24 = arith.constant 0 : i32
    %47 = arith.cmpi eq, %arg1, %c0_i32_24 : i32
    %48 = arith.extui %47 : i1 to i32
    %c0_i32_25 = arith.constant 0 : i32
    %49 = arith.cmpi ne, %48, %c0_i32_25 : i32
    scf.if %49 {
      %c0_26 = arith.constant 0 : index
      %c0_27 = arith.constant 0 : index
      %50 = vector.load %arg8[%c0_26, %c0_27] : memref<64x128xf32, #tpu.memory_space<vmem>>, vector<64x128xf32>
      %c0_28 = arith.constant 0 : index
      %c0_29 = arith.constant 0 : index
      %51 = vector.load %arg6[%c0_28, %c0_29] : memref<1x128xf32, #tpu.memory_space<vmem>>, vector<1x128xf32>
      %52 = vector.broadcast %51 : vector<1x128xf32> to vector<64x128xf32>
      %53 = arith.addf %50, %52 : vector<64x128xf32>
      %c0_30 = arith.constant 0 : index
      %c0_31 = arith.constant 0 : index
      %54 = vector.load %arg7[%c0_30, %c0_31] : memref<64x128xf32, #tpu.memory_space<vmem>>, vector<64x128xf32>
      tpu.vector_store %arg7[%c0_30, %c0_31], %53 {strides = array<i32>} : memref<64x128xf32, #tpu.memory_space<vmem>>, vector<64x128xf32>,
    } else {
    }
    return
  }
  func.func @transform_0(%arg0: i32, %arg1: i32) -> (i32, i32) {
    %c0_i32 = arith.constant 0 : i32
    %c0_i32_0 = arith.constant 0 : i32
    return %arg0, %c0_i32 : i32, i32
  }
  func.func @transform_1(%arg0: i32, %arg1: i32) -> (i32, i32) {
    %c0_i32 = arith.constant 0 : i32
    %c0_i32_0 = arith.constant 0 : i32
    return %c0_i32, %arg1 : i32, i32
  }
  func.func @transform_2(%arg0: i32, %arg1: i32) -> (i32, i32) {
    %c0_i32 = arith.constant 0 : i32
    %c0_i32_0 = arith.constant 0 : i32
    return %c0_i32, %arg1 : i32, i32
  }
  func.func @transform_3(%arg0: i32, %arg1: i32) -> (i32, i32) {
    %c0_i32 = arith.constant 0 : i32
    %c0_i32_0 = arith.constant 0 : i32
    return %arg1, %c0_i32 : i32, i32
  }
  func.func @transform_4(%arg0: i32, %arg1: i32) -> (i32, i32) {
    %c0_i32 = arith.constant 0 : i32
    %c0_i32_0 = arith.constant 0 : i32
    %c0_i32_1 = arith.constant 0 : i32
    return %c0_i32, %c0_i32_0 : i32, i32
  }
  func.func @transform_5(%arg0: i32, %arg1: i32) -> (i32, i32) {
    %c0_i32 = arith.constant 0 : i32
    %c0_i32_0 = arith.constant 0 : i32
    return %arg0, %c0_i32 : i32, i32
  }
}

</mosaic_0001>

<llo_original>
// kernel: tpu_custom_call.1
$region0: #{tpu_custom_call.1}
  #allocation0 [shape = 'u32[]', space=smem, size = 0x4, offset = 0x4, fixed_abs, tag = 'smem constant byte address 0x4 - core index']
  #allocation1 [shape = 'u32[144,128]{1,0:T(1,128)}', space=vmem, size = 0x12000, scoped, tag = 'internal scratch']
  #allocation2 [shape = 'f32[64,128]{1,0:T(8,128)}', space=vmem, size = 0x8000, scoped, tag = 'scratch operand']
  %s0 = inlined_call_operand.hbm [shape: f32[128,128], index: 0, kind: input, shape index: {}]
  %s1 = inlined_call_operand.hbm [shape: f32[128,128], index: 1, kind: input, shape index: {}]
  %s2 = inlined_call_operand.vmem [shape: f32[1,128], index: 2, kind: input, shape index: {}]
  %s3 = inlined_call_operand.hbm [shape: f32[128,128], index: 3, kind: input, shape index: {}]
  %s4 = inlined_call_operand.vmem [shape: f32[1,128], index: 4, kind: input, shape index: {}]
  %s5 = inlined_call_operand.hbm [shape: f32[128,128], index: 5, kind: output, shape index: {}]
  %s6 = sld [smem:[#allocation0]]
  $region73: #{tpu_custom_call.1} parent=0
    _
  %s8 = ssub.s32 1, %s6
  %s9 = scalar_select 0, %s8, %s6
  $region1: #{tpu_custom_call.1} parent=0
    #allocation3 [shape = 'u8[65536]{0}', space=vmem, size = 0x10000, scoped, tag = 'input window, operand 0']
    #allocation4 [shape = 's32[2]{0}', space=sflag, size = 0x8, scoped, tag = 'scoped memory for tpu_custom_call.1']
    #allocation5 [shape = 's32[2]{0}', space=sflag, size = 0x8, scoped, tag = 'scoped memory for tpu_custom_call.1']
    #allocation6 [shape = 'u8[65536]{0}', space=vmem, size = 0x10000, scoped, tag = 'input window, operand 1, single buffered']
    #allocation7 [shape = 's32[1]{0}', space=sflag, size = 0x4, scoped, tag = 'scoped memory for tpu_custom_call.1']
    #allocation8 [shape = 'u8[65536]{0}', space=vmem, size = 0x10000, scoped, tag = 'input window, operand 3, single buffered']
    #allocation9 [shape = 'u8[65536]{0}', space=vmem, size = 0x10000, scoped, tag = 'output window, operand 0']
    %10 = vsyncpa [#allocation4], 0
    %s11 = scalar_lea.sflag [#allocation4], 1
    %12 = vsyncpa %s11, 0
    %13 = vsyncpa [#allocation7], 0
    %14 = vsyncpa [#allocation5], 0
    %s15 = scalar_lea.sflag [#allocation5], 1
    %16 = vsyncpa %s15, 0
    loop: start=0, step=1, limit=4
    $region2: #{tpu_custom_call.1} parent=1 // loop_pre_header
      _
    $region3: #{tpu_custom_call.1} parent=1 // loop_header
      %s18 = sphi 0, %s22
      %p19 = scmp.ge.s32.totalorder %s18, 4
      %s25 = sphi 0, %s37
      %s26 = sphi 0, %s33
      %s27 = sphi 0, %s25
      %s28 = sphi 0, %s26
      %s29 = sphi 0, %s27
      %s30 = sphi 0, %s28
      %s40 = sphi 0, %s42
      %s43 = sphi 0, %s40
      %s44 = sphi 0, %s43
      %s60 = sphi 0, %s44
      %s66 = sphi 0, %s68
      %s69 = sphi 0, %s66
      %s70 = sphi 0, %s69
      %s86 = sphi 0, %s70
      %s92 = sphi 0, %s94
      %s95 = sphi 0, %s92
      %s96 = sphi 0, %s95
      %s112 = sphi 0, %s96
      %s118 = sphi 0, %s120
      %s121 = sphi 0, %s118
      %s122 = sphi 0, %s121
      %s138 = sphi 0, %s122
      %s142 = sphi 0, %s142
      %s144 = sphi 0, %s142
      %s145 = sphi 0, %s144
      %s159 = sphi 0, %s145
      %s165 = sphi 0, %s167
      %s168 = sphi 0, %s165
      %s169 = sphi 0, %s168
      %s185 = sphi 0, %s169
    $region4: #{tpu_custom_call.1} parent=1 // loop_header_branch
      %21 = sbr.rel (%p19) target = $region8
    $region5: #{tpu_custom_call.1} parent=1 // loop_body
      %s23 = ssub.s32 %s18, 1
      %s24 = ssub.s32 %s18, 2
      %s31 = sadd.s32 1, %s26
      %p32 = scmp.ge.s32.totalorder %s31, 1
      %s33 = scalar_select %p32, 0, %s31
      %s34 = sadd.s32 1, %s25
      %s35 = scalar_select %p32, %s34, %s25
      %p36 = scmp.ge.s32.totalorder %s35, 2
      %s37 = scalar_select %p36, 0, %s35
      %s38 = ssub.s32 %s25, %s37
      %p39 = scmp.eq.s32.totalorder %s38, 0
      %s41 = sadd.s32 %s40, 1
      %s42 = scalar_select %p39, %s40, %s41
      %p45 = pneg %p39
      %p46 = scmp.eq.s32.totalorder %s18, 1
      %p47 = por %p45, %p46
      %p48 = scmp.ne.s32.totalorder %s40, %s43
      %p49 = scmp.eq.s32.totalorder %s18, 0
      %p50 = por %p48, %p49
      %p51 = scmp.ne.s32.totalorder %s40, %s43
      %p52 = scmp.eq.s32.totalorder %s23, 1
      %p53 = por %p51, %p52
      %p54 = scmp.ne.s32.totalorder %s43, %s44
      %p55 = scmp.eq.s32.totalorder %s23, 0
      %p56 = por %p54, %p55
      %p57 = scmp.ne.s32.totalorder %s43, %s44
      %p58 = scmp.eq.s32.totalorder %s24, 1
      %p59 = por %p57, %p58
      %p61 = scmp.ne.s32.totalorder %s44, %s60
      %p62 = scmp.eq.s32.totalorder %s24, 0
      %p63 = por %p61, %p62
      %s64 = ssub.s32 %s26, %s33
      %p65 = scmp.eq.s32.totalorder %s64, 0
      %s67 = sadd.s32 %s66, 1
      %s68 = scalar_select %p65, %s66, %s67
      %p71 = pneg %p65
      %p72 = scmp.eq.s32.totalorder %s18, 1
      %p73 = por %p71, %p72
      %p74 = scmp.ne.s32.totalorder %s66, %s69
      %p75 = scmp.eq.s32.totalorder %s18, 0
      %p76 = por %p74, %p75
      %p77 = scmp.ne.s32.totalorder %s66, %s69
      %p78 = scmp.eq.s32.totalorder %s23, 1
      %p79 = por %p77, %p78
      %p80 = scmp.ne.s32.totalorder %s69, %s70
      %p81 = scmp.eq.s32.totalorder %s23, 0
      %p82 = por %p80, %p81
      %p83 = scmp.ne.s32.totalorder %s69, %s70
      %p84 = scmp.eq.s32.totalorder %s24, 1
      %p85 = por %p83, %p84
      %p87 = scmp.ne.s32.totalorder %s70, %s86
      %p88 = scmp.eq.s32.totalorder %s24, 0
      %p89 = por %p87, %p88
      %s90 = ssub.s32 %s26, %s33
      %p91 = scmp.eq.s32.totalorder %s90, 0
      %s93 = sadd.s32 %s92, 1
      %s94 = scalar_select %p91, %s92, %s93
      %p97 = pneg %p91
      %p98 = scmp.eq.s32.totalorder %s18, 1
      %p99 = por %p97, %p98
      %p100 = scmp.ne.s32.totalorder %s92, %s95
      %p101 = scmp.eq.s32.totalorder %s18, 0
      %p102 = por %p100, %p101
      %p103 = scmp.ne.s32.totalorder %s92, %s95
      %p104 = scmp.eq.s32.totalorder %s23, 1
      %p105 = por %p103, %p104
      %p106 = scmp.ne.s32.totalorder %s95, %s96
      %p107 = scmp.eq.s32.totalorder %s23, 0
      %p108 = por %p106, %p107
      %p109 = scmp.ne.s32.totalorder %s95, %s96
      %p110 = scmp.eq.s32.totalorder %s24, 1
      %p111 = por %p109, %p110
      %p113 = scmp.ne.s32.totalorder %s96, %s112
      %p114 = scmp.eq.s32.totalorder %s24, 0
      %p115 = por %p113, %p114
      %s116 = ssub.s32 %s26, %s33
      %p117 = scmp.eq.s32.totalorder %s116, 0
      %s119 = sadd.s32 %s118, 1
      %s120 = scalar_select %p117, %s118, %s119
      %p123 = pneg %p117
      %p124 = scmp.eq.s32.totalorder %s18, 1
      %p125 = por %p123, %p124
      %p126 = scmp.ne.s32.totalorder %s118, %s121
      %p127 = scmp.eq.s32.totalorder %s18, 0
      %p128 = por %p126, %p127
      %p129 = scmp.ne.s32.totalorder %s118, %s121
      %p130 = scmp.eq.s32.totalorder %s23, 1
      %p131 = por %p129, %p130
      %p132 = scmp.ne.s32.totalorder %s121, %s122
      %p133 = scmp.eq.s32.totalorder %s23, 0
      %p134 = por %p132, %p133
      %p135 = scmp.ne.s32.totalorder %s121, %s122
      %p136 = scmp.eq.s32.totalorder %s24, 1
      %p137 = por %p135, %p136
      %p139 = scmp.ne.s32.totalorder %s122, %s138
      %p140 = scmp.eq.s32.totalorder %s24, 0
      %p141 = por %p139, %p140
      %s143 = sadd.s32 %s142, 1
      %p146 = scmp.eq.s32.totalorder %s18, 1
      %p147 = scmp.ne.s32.totalorder %s142, %s144
      %p148 = scmp.eq.s32.totalorder %s18, 0
      %p149 = por %p147, %p148
      %p150 = scmp.ne.s32.totalorder %s142, %s144
      %p151 = scmp.eq.s32.totalorder %s23, 1
      %p152 = por %p150, %p151
      %p153 = scmp.ne.s32.totalorder %s144, %s145
      %p154 = scmp.eq.s32.totalorder %s23, 0
      %p155 = por %p153, %p154
      %p156 = scmp.ne.s32.totalorder %s144, %s145
      %p157 = scmp.eq.s32.totalorder %s24, 1
      %p158 = por %p156, %p157
      %p160 = scmp.ne.s32.totalorder %s145, %s159
      %p161 = scmp.eq.s32.totalorder %s24, 0
      %p162 = por %p160, %p161
      %s163 = ssub.s32 %s25, %s37
      %p164 = scmp.eq.s32.totalorder %s163, 0
      %s166 = sadd.s32 %s165, 1
      %s167 = scalar_select %p164, %s165, %s166
      %p170 = pneg %p164
      %p171 = scmp.eq.s32.totalorder %s18, 1
      %p172 = por %p170, %p171
      %p173 = scmp.ne.s32.totalorder %s165, %s168
      %p174 = scmp.eq.s32.totalorder %s18, 0
      %p175 = por %p173, %p174
      %p176 = scmp.ne.s32.totalorder %s165, %s168
      %p177 = scmp.eq.s32.totalorder %s23, 1
      %p178 = por %p176, %p177
      %p179 = scmp.ne.s32.totalorder %s168, %s169
      %p180 = scmp.eq.s32.totalorder %s23, 0
      %p181 = por %p179, %p180
      %p182 = scmp.ne.s32.totalorder %s168, %s169
      %p183 = scmp.eq.s32.totalorder %s24, 1
      %p184 = por %p182, %p183
      %p186 = scmp.ne.s32.totalorder %s169, %s185
      %p187 = scmp.eq.s32.totalorder %s24, 0
      %p188 = por %p186, %p187
      %p189 = scmp.le.s32.totalorder 1, %s18
      %p190 = scmp.lt.s32.totalorder %s18, 3
      %p191 = pnand %p189, %p190
      %p192 = pneg %p191
      // Predicated region
      $region9: #{tpu_custom_call.1} parent=5 // pred_check
        _
      $region10: #{tpu_custom_call.1} parent=5 // pred_check_branch
        %194 = sbr.rel (%p191) target = $region12
      $region11: #{tpu_custom_call.1} parent=5 // pred_region
        %s195 = ssub.s32 %s18, 1
        // Predicated region
        $region13: #{tpu_custom_call.1} parent=11 // pred_check
          %p196 = pneg %p82
        $region14: #{tpu_custom_call.1} parent=11 // pred_check_branch
          %198 = sbr.rel (%p196) target = $region16
        $region15: #{tpu_custom_call.1} parent=11 // pred_region
          %s200 = ssub.s32 2048, 2048
          %201 = vsyncadd [#allocation7], %s200
          %s202 = smul.addr %s28, 128
          %s203 = scalar_lea.hbm %s1, %s202
          %s204 = sshll.u32 [#allocation6], 4
          %s205 = int_to_ptr.vmem [resolvable:$true] %s204
          %210 = dma.hbm_to_vmem [thread:$0]  %s203, 2048, %s205, [#allocation7], 128, 128, 8
        $region16: #{tpu_custom_call.1} parent=11 // pred_fallthru
          _
        // Predicated region
        $region17: #{tpu_custom_call.1} parent=11 // pred_check
          %p211 = pneg %p108
        $region18: #{tpu_custom_call.1} parent=11 // pred_check_branch
          %213 = sbr.rel (%p211) target = $region20
        $region19: #{tpu_custom_call.1} parent=11 // pred_region
          %p214 = scmp.lt.s32.totalorder %s28, 0
          %s215 = scalar_select %p214, %s28, 0
          %s216 = scalar_lea.vmem %s2, %s215
        $region20: #{tpu_custom_call.1} parent=11 // pred_fallthru
          _
        // Predicated region
        $region21: #{tpu_custom_call.1} parent=11 // pred_check
          %p217 = pneg %p134
        $region22: #{tpu_custom_call.1} parent=11 // pred_check_branch
          %219 = sbr.rel (%p217) target = $region24
        $region23: #{tpu_custom_call.1} parent=11 // pred_region
          %s220 = smul.u32 16, %s28
          %s222 = ssub.s32 2048, 2048
          %223 = vsyncadd [#allocation7], %s222
          %s224 = smul.addr %s220, 128
          %s225 = scalar_lea.hbm %s3, %s224
          %s226 = sshll.u32 [#allocation8], 4
          %s227 = int_to_ptr.vmem [resolvable:$true] %s226
          %232 = dma.hbm_to_vmem [thread:$0]  %s225, 2048, %s227, [#allocation7], 128, 128, 8
        $region24: #{tpu_custom_call.1} parent=11 // pred_fallthru
          _
        // Predicated region
        $region25: #{tpu_custom_call.1} parent=11 // pred_check
          %p233 = pneg %p155
        $region26: #{tpu_custom_call.1} parent=11 // pred_check_branch
          %235 = sbr.rel (%p233) target = $region28
        $region27: #{tpu_custom_call.1} parent=11 // pred_region
          _
        $region28: #{tpu_custom_call.1} parent=11 // pred_fallthru
          _
      $region12: #{tpu_custom_call.1} parent=5 // pred_fallthru
        _
      %p236 = scmp.lt.s32.totalorder %s18, 2
      // Predicated region
      $region29: #{tpu_custom_call.1} parent=5 // pred_check
        %p237 = pneg %p236
      $region30: #{tpu_custom_call.1} parent=5 // pred_check_branch
        %239 = sbr.rel (%p237) target = $region32
      $region31: #{tpu_custom_call.1} parent=5 // pred_region
        // Predicated region
        $region33: #{tpu_custom_call.1} parent=31 // pred_check
          %p240 = pneg %p50
        $region34: #{tpu_custom_call.1} parent=31 // pred_check_branch
          %242 = sbr.rel (%p240) target = $region36
        $region35: #{tpu_custom_call.1} parent=31 // pred_region
          %s243 = sand.u32 %s40, 1
          %s244 = scalar_lea.sflag [#allocation4], %s243
          %s245 = sand.u32 %s40, 1
          %s246 = smul.addr %s245, 64
          %s247 = scalar_lea.vmem [#allocation3], %s246
          %s248 = smul.u32 8, %s25
          %s250 = ssub.s32 1024, 1024
          %251 = vsyncadd %s244, %s250
          %s252 = smul.addr %s248, 128
          %s253 = scalar_lea.hbm %s0, %s252
          %s254 = sshll.u32 %s247, 4
          %s255 = int_to_ptr.vmem [resolvable:$true] %s254
          %260 = dma.hbm_to_vmem [thread:$0]  %s253, 1024, %s255, %s244, 128, 128, 8
        $region36: #{tpu_custom_call.1} parent=31 // pred_fallthru
          _
      $region32: #{tpu_custom_call.1} parent=5 // pred_fallthru
        _
      %p261 = scmp.le.s32.totalorder 1, %s18
      %p262 = scmp.lt.s32.totalorder %s18, 3
      %p263 = pnand %p261, %p262
      %p264 = pneg %p263
      // Predicated region
      $region37: #{tpu_custom_call.1} parent=5 // pred_check
        _
      $region38: #{tpu_custom_call.1} parent=5 // pred_check_branch
        %266 = sbr.rel (%p263) target = $region40
      $region39: #{tpu_custom_call.1} parent=5 // pred_region
        %s267 = ssub.s32 %s18, 1
        %s268 = sand.u32 %s43, 1
        %s269 = scalar_lea.sflag [#allocation4], %s268
        %s270 = sand.u32 %s43, 1
        %s271 = smul.addr %s270, 64
        %s272 = scalar_lea.vmem [#allocation3], %s271
        // Predicated region
        $region41: #{tpu_custom_call.1} parent=39 // pred_check
          %p273 = pneg %p56
        $region42: #{tpu_custom_call.1} parent=39 // pred_check_branch
          %275 = sbr.rel (%p273) target = $region44
        $region43: #{tpu_custom_call.1} parent=39 // pred_region
          %276 = dma.done %s269, 1024
        $region44: #{tpu_custom_call.1} parent=39 // pred_fallthru
          _
        // Predicated region
        $region45: #{tpu_custom_call.1} parent=39 // pred_check
          %p277 = pneg %p82
        $region46: #{tpu_custom_call.1} parent=39 // pred_check_branch
          %279 = sbr.rel (%p277) target = $region48
        $region47: #{tpu_custom_call.1} parent=39 // pred_region
          %280 = dma.done [#allocation7], 2048
        $region48: #{tpu_custom_call.1} parent=39 // pred_fallthru
          _
        // Predicated region
        $region49: #{tpu_custom_call.1} parent=39 // pred_check
          %p281 = pneg %p134
        $region50: #{tpu_custom_call.1} parent=39 // pred_check_branch
          %283 = sbr.rel (%p281) target = $region52
        $region51: #{tpu_custom_call.1} parent=39 // pred_region
          %284 = dma.done [#allocation7], 2048
        $region52: #{tpu_custom_call.1} parent=39 // pred_fallthru
          _
        %s285 = sand.u32 %s43, 1
        %s286 = scalar_lea.sflag [#allocation4], %s285
        %s287 = sand.u32 %s43, 1
        %s288 = smul.addr %s287, 64
        %s289 = scalar_lea.vmem [#allocation3], %s288
        %p290 = pneg %p56
        %p291 = pneg %p53
        %p292 = pneg %p82
        %p293 = pneg %p79
        %p294 = scmp.lt.s32.totalorder %s28, 0
        %s295 = scalar_select %p294, %s28, 0
        %s296 = scalar_lea.vmem %s2, %s295
        %p297 = pneg %p108
        %p298 = pneg %p105
        %p299 = pneg %p134
        %p300 = pneg %p131
        %p301 = pneg %p155
        %p302 = pneg %p152
        %p303 = pneg %p181
        %p304 = pneg %p178
        %s305 = sand.u32 %s168, 1
        %s306 = scalar_lea.sflag [#allocation5], %s305
        %s307 = sand.u32 %s168, 1
        %s308 = smul.addr %s307, 64
        %s309 = scalar_lea.vmem [#allocation9], %s308
        %s310 = smul.u32 8, %s27
        %p311 = scmp.lt.s32.totalorder %s28, 0
        %s312 = scalar_select %p311, %s28, 0
        %s313 = scalar_lea.vmem %s2, %s312
        %s314 = smul.u32 16, %s28
        %s315 = smul.u32 8, %s27
        %p316 = scmp.eq.s32.totalorder %s28, 0
        // Predicated region
        $region53: #{tpu_custom_call.1} parent=39 // pred_check
          %p317 = pneg %p316
        $region54: #{tpu_custom_call.1} parent=39 // pred_check_branch
          %319 = sbr.rel (%p317) target = $region56
        $region55: #{tpu_custom_call.1} parent=39 // pred_region
          %320 = vst [vmem:[#allocation2] sm:$0xff] 0.0
          %321 = vst [vmem:[#allocation2 + $0x8] sm:$0xff] 0.0
          %322 = vst [vmem:[#allocation2 + $0x10] sm:$0xff] 0.0
          %323 = vst [vmem:[#allocation2 + $0x18] sm:$0xff] 0.0
          %324 = vst [vmem:[#allocation2 + $0x20] sm:$0xff] 0.0
          %325 = vst [vmem:[#allocation2 + $0x28] sm:$0xff] 0.0
          %326 = vst [vmem:[#allocation2 + $0x30] sm:$0xff] 0.0
          %327 = vst [vmem:[#allocation2 + $0x38] sm:$0xff] 0.0
        $region56: #{tpu_custom_call.1} parent=39 // pred_fallthru
          _
        %v328 = vld [vmem:[%s272] sm:$0xff]
        %v329 = vld [vmem:[%s272 + $0x8] sm:$0xff]
        %v330 = vld [vmem:[%s272 + $0x10] sm:$0xff]
        %v331 = vld [vmem:[%s272 + $0x18] sm:$0xff]
        %v332 = vld [vmem:[%s272 + $0x20] sm:$0xff]
        %v333 = vld [vmem:[%s272 + $0x28] sm:$0xff]
        %v334 = vld [vmem:[%s272 + $0x30] sm:$0xff]
        %v335 = vld [vmem:[%s272 + $0x38] sm:$0xff]
        %v336 = vld [vmem:[#allocation6] sm:$0xff]
        %v337 = vld [vmem:[#allocation6 + $0x8] sm:$0xff]
        %v338 = vld [vmem:[#allocation6 + $0x10] sm:$0xff]
        %v339 = vld [vmem:[#allocation6 + $0x18] sm:$0xff]
        %v340 = vld [vmem:[#allocation6 + $0x20] sm:$0xff]
        %v341 = vld [vmem:[#allocation6 + $0x28] sm:$0xff]
        %v342 = vld [vmem:[#allocation6 + $0x30] sm:$0xff]
        %v343 = vld [vmem:[#allocation6 + $0x38] sm:$0xff]
        %v344 = vld [vmem:[#allocation6 + $0x40] sm:$0xff]
        %v345 = vld [vmem:[#allocation6 + $0x48] sm:$0xff]
        %v346 = vld [vmem:[#allocation6 + $0x50] sm:$0xff]
        %v347 = vld [vmem:[#allocation6 + $0x58] sm:$0xff]
        %v348 = vld [vmem:[#allocation6 + $0x60] sm:$0xff]
        %v349 = vld [vmem:[#allocation6 + $0x68] sm:$0xff]
        %v350 = vld [vmem:[#allocation6 + $0x70] sm:$0xff]
        %v351 = vld [vmem:[#allocation6 + $0x78] sm:$0xff]
        %v352 = vld [vmem:[%s313] sm:$0x1]
        %v354 = vlaneseq
        %v355 = vshrl.u32 %v354, 7
        %v356 = vsub.s32 0, %v355
        %v357 = vrot.slane %v352, %v356
        %359 = vmatprep.subr.mxu0 0.0
        %360 = vmatpush1.msra.mxu0 %v351
        %361 = vmatprep.subr.mxu0 0.0
        %362 = vmatpush1.msra.mxu0 %v350
        %363 = vmatprep.subr.mxu0 0.0
        %364 = vmatpush1.msra.mxu0 %v349
        %365 = vmatprep.subr.mxu0 0.0
        %366 = vmatpush1.msra.mxu0 %v348
        %367 = vmatprep.subr.mxu0 0.0
        %368 = vmatpush1.msra.mxu0 %v347
        %369 = vmatprep.subr.mxu0 0.0
        %370 = vmatpush1.msra.mxu0 %v346
        %371 = vmatprep.subr.mxu0 0.0
        %372 = vmatpush1.msra.mxu0 %v345
        %373 = vmatprep.subr.mxu0 0.0
        %374 = vmatpush1.msra.mxu0 %v344
        %375 = vmatprep.subr.mxu0 0.0
        %376 = vmatpush1.msra.mxu0 %v343
        %377 = vmatprep.subr.mxu0 0.0
        %378 = vmatpush1.msra.mxu0 %v342
        %379 = vmatprep.subr.mxu0 0.0
        %380 = vmatpush1.msra.mxu0 %v341
        %381 = vmatprep.subr.mxu0 0.0
        %382 = vmatpush1.msra.mxu0 %v340
        %383 = vmatprep.subr.mxu0 0.0
        %384 = vmatpush1.msra.mxu0 %v339
        %385 = vmatprep.subr.mxu0 0.0
        %386 = vmatpush1.msra.mxu0 %v338
        %387 = vmatprep.subr.mxu0 0.0
        %388 = vmatpush1.msra.mxu0 %v337
        %389 = vmatprep.subr.mxu0 0.0
        %390 = vmatpush1.msra.mxu0 %v336
        %391 = vmatprep.subr.mxu0 0.0
        %392 = vmatpush2.msra.mxu0 0.0
        %393 = vmatprep.subr.mxu0 0.0
        %394 = vmatpush2.msra.mxu0 0.0
        %395 = vmatprep.subr.mxu0 0.0
        %396 = vmatpush2.msra.mxu0 0.0
        %397 = vmatprep.subr.mxu0 0.0
        %398 = vmatpush2.msra.mxu0 0.0
        %399 = vmatprep.subr.mxu0 0.0
        %400 = vmatpush2.msra.mxu0 0.0
        %401 = vmatprep.subr.mxu0 0.0
        %402 = vmatpush2.msra.mxu0 0.0
        %403 = vmatprep.subr.mxu0 0.0
        %404 = vmatpush2.msra.mxu0 0.0
        %405 = vmatprep.subr.mxu0 0.0
        %406 = vmatpush2.msra.mxu0 0.0
        %407 = vmatprep.subr.mxu0 0.0
        %408 = vmatpush2.msra.mxu0 0.0
        %409 = vmatprep.subr.mxu0 0.0
        %410 = vmatpush2.msra.mxu0 0.0
        %411 = vmatprep.subr.mxu0 0.0
        %412 = vmatpush2.msra.mxu0 0.0
        %413 = vmatprep.subr.mxu0 0.0
        %414 = vmatpush2.msra.mxu0 0.0
        %415 = vmatprep.subr.mxu0 0.0
        %416 = vmatpush2.msra.mxu0 0.0
        %417 = vmatprep.subr.mxu0 0.0
        %418 = vmatpush2.msra.mxu0 0.0
        %419 = vmatprep.subr.mxu0 0.0
        %420 = vmatpush2.msra.mxu0 0.0
        %421 = vmatprep.subr.mxu0 0.0
        %422 = vmatpush2.msra.mxu0 0.0
        %423 = vmatprep.mubr.f32.mxu0 0.0
        %424 = vmatmul.mubr.f32.gmra.mxu0 %v328
        %v425 = vpop.f32.mrf.mxu0
        %v426 = vadd.f32 %v357, %v425
        %v427 = vpop.f32.mrf.mxu0
        %428 = vmatprep.mubr.f32.mxu0 0.0
        %429 = vmatmul.mubr.f32.gmra.mxu0 %v329
        %v430 = vpop.f32.mrf.mxu0
        %v431 = vadd.f32 %v357, %v430
        %v432 = vpop.f32.mrf.mxu0
        %433 = vmatprep.mubr.f32.mxu0 0.0
        %434 = vmatmul.mubr.f32.gmra.mxu0 %v330
        %v435 = vpop.f32.mrf.mxu0
        %v436 = vadd.f32 %v357, %v435
        %v437 = vpop.f32.mrf.mxu0
        %438 = vmatprep.mubr.f32.mxu0 0.0
        %439 = vmatmul.mubr.f32.gmra.mxu0 %v331
        %v440 = vpop.f32.mrf.mxu0
        %v441 = vadd.f32 %v357, %v440
        %v442 = vpop.f32.mrf.mxu0
        %443 = vmatprep.mubr.f32.mxu0 0.0
        %444 = vmatmul.mubr.f32.gmra.mxu0 %v332
        %v445 = vpop.f32.mrf.mxu0
        %v446 = vadd.f32 %v357, %v445
        %v447 = vpop.f32.mrf.mxu0
        %448 = vmatprep.mubr.f32.mxu0 0.0
        %449 = vmatmul.mubr.f32.gmra.mxu0 %v333
        %v450 = vpop.f32.mrf.mxu0
        %v451 = vadd.f32 %v357, %v450
        %v452 = vpop.f32.mrf.mxu0
        %453 = vmatprep.mubr.f32.mxu0 0.0
        %454 = vmatmul.mubr.f32.gmra.mxu0 %v334
        %v455 = vpop.f32.mrf.mxu0
        %v456 = vadd.f32 %v357, %v455
        %v457 = vpop.f32.mrf.mxu0
        %458 = vmatprep.mubr.f32.mxu0 0.0
        %459 = vmatmul.mubr.f32.gmra.mxu0 %v335
        %v460 = vpop.f32.mrf.mxu0
        %v461 = vadd.f32 %v357, %v460
        %v462 = vpop.f32.mrf.mxu0
        %463 = vdwg.mxu0
        %v464 = vand.u32 2147483647, %v426
        %v465 = vand.u32 2147483647, %v431
        %v466 = vand.u32 2147483647, %v436
        %v467 = vand.u32 2147483647, %v441
        %v468 = vand.u32 2147483647, %v446
        %v469 = vand.u32 2147483647, %v451
        %v470 = vand.u32 2147483647, %v456
        %v471 = vand.u32 2147483647, %v461
        %v472 = vmul.f32 %v464, 0.23164189
        %v473 = vmul.f32 %v465, 0.23164189
        %v474 = vmul.f32 %v466, 0.23164189
        %v475 = vmul.f32 %v467, 0.23164189
        %v476 = vmul.f32 %v468, 0.23164189
        %v477 = vmul.f32 %v469, 0.23164189
        %v478 = vmul.f32 %v470, 0.23164189
        %v479 = vmul.f32 %v471, 0.23164189
        %v480 = vadd.f32 %v472, 1.0
        %v481 = vadd.f32 %v473, 1.0
        %v482 = vadd.f32 %v474, 1.0
        %v483 = vadd.f32 %v475, 1.0
        %v484 = vadd.f32 %v476, 1.0
        %v485 = vadd.f32 %v477, 1.0
        %v486 = vadd.f32 %v478, 1.0
        %v487 = vadd.f32 %v479, 1.0
        %v488 = vrcp.pop %v480
        %v489 = vrcp.pop %v481
        %v490 = vrcp.pop %v482
        %v491 = vrcp.pop %v483
        %v492 = vrcp.pop %v484
        %v493 = vrcp.pop %v485
        %v494 = vrcp.pop %v486
        %v495 = vrcp.pop %v487
        %v496 = vmul.f32 %v488, 1.0614054
        %v497 = vmul.f32 %v489, 1.0614054
        %v498 = vmul.f32 %v490, 1.0614054
        %v499 = vmul.f32 %v491, 1.0614054
        %v500 = vmul.f32 %v492, 1.0614054
        %v501 = vmul.f32 %v493, 1.0614054
        %v502 = vmul.f32 %v494, 1.0614054
        %v503 = vmul.f32 %v495, 1.0614054
        %v504 = vadd.f32 %v496, -1.4531521
        %v505 = vadd.f32 %v497, -1.4531521
        %v506 = vadd.f32 %v498, -1.4531521
        %v507 = vadd.f32 %v499, -1.4531521
        %v508 = vadd.f32 %v500, -1.4531521
        %v509 = vadd.f32 %v501, -1.4531521
        %v510 = vadd.f32 %v502, -1.4531521
        %v511 = vadd.f32 %v503, -1.4531521
        %v512 = vmul.f32 %v504, %v488
        %v513 = vmul.f32 %v505, %v489
        %v514 = vmul.f32 %v506, %v490
        %v515 = vmul.f32 %v507, %v491
        %v516 = vmul.f32 %v508, %v492
        %v517 = vmul.f32 %v509, %v493
        %v518 = vmul.f32 %v510, %v494
        %v519 = vmul.f32 %v511, %v495
        %v520 = vadd.f32 %v512, 1.4214138
        %v521 = vadd.f32 %v513, 1.4214138
        %v522 = vadd.f32 %v514, 1.4214138
        %v523 = vadd.f32 %v515, 1.4214138
        %v524 = vadd.f32 %v516, 1.4214138
        %v525 = vadd.f32 %v517, 1.4214138
        %v526 = vadd.f32 %v518, 1.4214138
        %v527 = vadd.f32 %v519, 1.4214138
        %v528 = vmul.f32 %v520, %v488
        %v529 = vmul.f32 %v521, %v489
        %v530 = vmul.f32 %v522, %v490
        %v531 = vmul.f32 %v523, %v491
        %v532 = vmul.f32 %v524, %v492
        %v533 = vmul.f32 %v525, %v493
        %v534 = vmul.f32 %v526, %v494
        %v535 = vmul.f32 %v527, %v495
        %v536 = vadd.f32 %v528, -0.28449672
        %v537 = vadd.f32 %v529, -0.28449672
        %v538 = vadd.f32 %v530, -0.28449672
        %v539 = vadd.f32 %v531, -0.28449672
        %v540 = vadd.f32 %v532, -0.28449672
        %v541 = vadd.f32 %v533, -0.28449672
        %v542 = vadd.f32 %v534, -0.28449672
        %v543 = vadd.f32 %v535, -0.28449672
        %v544 = vmul.f32 %v536, %v488
        %v545 = vmul.f32 %v537, %v489
        %v546 = vmul.f32 %v538, %v490
        %v547 = vmul.f32 %v539, %v491
        %v548 = vmul.f32 %v540, %v492
        %v549 = vmul.f32 %v541, %v493
        %v550 = vmul.f32 %v542, %v494
        %v551 = vmul.f32 %v543, %v495
        %v552 = vadd.f32 %v544, 0.2548296
        %v553 = vadd.f32 %v545, 0.2548296
        %v554 = vadd.f32 %v546, 0.2548296
        %v555 = vadd.f32 %v547, 0.2548296
        %v556 = vadd.f32 %v548, 0.2548296
        %v557 = vadd.f32 %v549, 0.2548296
        %v558 = vadd.f32 %v550, 0.2548296
        %v559 = vadd.f32 %v551, 0.2548296
        %v560 = vmul.f32 %v552, %v488
        %v561 = vmul.f32 %v553, %v489
        %v562 = vmul.f32 %v554, %v490
        %v563 = vmul.f32 %v555, %v491
        %v564 = vmul.f32 %v556, %v492
        %v565 = vmul.f32 %v557, %v493
        %v566 = vmul.f32 %v558, %v494
        %v567 = vmul.f32 %v559, %v495
        %v568 = vmul.f32 %v426, 0.5
        %v569 = vmul.f32 %v431, 0.5
        %v570 = vmul.f32 %v436, 0.5
        %v571 = vmul.f32 %v441, 0.5
        %v572 = vmul.f32 %v446, 0.5
        %v573 = vmul.f32 %v451, 0.5
        %v574 = vmul.f32 %v456, 0.5
        %v575 = vmul.f32 %v461, 0.5
        %v576 = vmul.f32 %v464, 0.5
        %v577 = vmul.f32 %v465, 0.5
        %v578 = vmul.f32 %v466, 0.5
        %v579 = vmul.f32 %v467, 0.5
        %v580 = vmul.f32 %v468, 0.5
        %v581 = vmul.f32 %v469, 0.5
        %v582 = vmul.f32 %v470, 0.5
        %v583 = vmul.f32 %v471, 0.5
        %v584 = vmul.f32 %v426, -0.5
        %v585 = vmul.f32 %v431, -0.5
        %v586 = vmul.f32 %v436, -0.5
        %v587 = vmul.f32 %v441, -0.5
        %v588 = vmul.f32 %v446, -0.5
        %v589 = vmul.f32 %v451, -0.5
        %v590 = vmul.f32 %v456, -0.5
        %v591 = vmul.f32 %v461, -0.5
        %v592 = vmul.f32 %v584, %v426
        %v593 = vmul.f32 %v585, %v431
        %v594 = vmul.f32 %v586, %v436
        %v595 = vmul.f32 %v587, %v441
        %v596 = vmul.f32 %v588, %v446
        %v597 = vmul.f32 %v589, %v451
        %v598 = vmul.f32 %v590, %v456
        %v599 = vmul.f32 %v591, %v461
        %v600 = vmul.f32 %v592, 1.442695
        %v601 = vpow.pop %v600
        %v602 = vmul.f32 %v593, 1.442695
        %v603 = vpow.pop %v602
        %v604 = vmul.f32 %v594, 1.442695
        %v605 = vpow.pop %v604
        %v606 = vmul.f32 %v595, 1.442695
        %v607 = vpow.pop %v606
        %v608 = vmul.f32 %v596, 1.442695
        %v609 = vpow.pop %v608
        %v610 = vmul.f32 %v597, 1.442695
        %v611 = vpow.pop %v610
        %v612 = vmul.f32 %v598, 1.442695
        %v613 = vpow.pop %v612
        %v614 = vmul.f32 %v599, 1.442695
        %v615 = vpow.pop %v614
        %v616 = vmul.f32 %v560, %v601
        %v617 = vmul.f32 %v561, %v603
        %v618 = vmul.f32 %v562, %v605
        %v619 = vmul.f32 %v563, %v607
        %v620 = vmul.f32 %v564, %v609
        %v621 = vmul.f32 %v565, %v611
        %v622 = vmul.f32 %v566, %v613
        %v623 = vmul.f32 %v567, %v615
        %v624 = vsub.f32 1.0, %v616
        %v625 = vsub.f32 1.0, %v617
        %v626 = vsub.f32 1.0, %v618
        %v627 = vsub.f32 1.0, %v619
        %v628 = vsub.f32 1.0, %v620
        %v629 = vsub.f32 1.0, %v621
        %v630 = vsub.f32 1.0, %v622
        %v631 = vsub.f32 1.0, %v623
        %v632 = vmul.f32 %v576, %v624
        %v633 = vmul.f32 %v577, %v625
        %v634 = vmul.f32 %v578, %v626
        %v635 = vmul.f32 %v579, %v627
        %v636 = vmul.f32 %v580, %v628
        %v637 = vmul.f32 %v581, %v629
        %v638 = vmul.f32 %v582, %v630
        %v639 = vmul.f32 %v583, %v631
        %v640 = vadd.f32 %v568, %v632
        %v641 = vadd.f32 %v569, %v633
        %v642 = vadd.f32 %v570, %v634
        %v643 = vadd.f32 %v571, %v635
        %v644 = vadd.f32 %v572, %v636
        %v645 = vadd.f32 %v573, %v637
        %v646 = vadd.f32 %v574, %v638
        %v647 = vadd.f32 %v575, %v639
        %v648 = vld [vmem:[#allocation2] sm:$0xff]
        %v649 = vld [vmem:[#allocation2 + $0x8] sm:$0xff]
        %v650 = vld [vmem:[#allocation2 + $0x10] sm:$0xff]
        %v651 = vld [vmem:[#allocation2 + $0x18] sm:$0xff]
        %v652 = vld [vmem:[#allocation2 + $0x20] sm:$0xff]
        %v653 = vld [vmem:[#allocation2 + $0x28] sm:$0xff]
        %v654 = vld [vmem:[#allocation2 + $0x30] sm:$0xff]
        %v655 = vld [vmem:[#allocation2 + $0x38] sm:$0xff]
        %v656 = vld [vmem:[#allocation8] sm:$0xff]
        %v657 = vld [vmem:[#allocation8 + $0x8] sm:$0xff]
        %v658 = vld [vmem:[#allocation8 + $0x10] sm:$0xff]
        %v659 = vld [vmem:[#allocation8 + $0x18] sm:$0xff]
        %v660 = vld [vmem:[#allocation8 + $0x20] sm:$0xff]
        %v661 = vld [vmem:[#allocation8 + $0x28] sm:$0xff]
        %v662 = vld [vmem:[#allocation8 + $0x30] sm:$0xff]
        %v663 = vld [vmem:[#allocation8 + $0x38] sm:$0xff]
        %v664 = vld [vmem:[#allocation8 + $0x40] sm:$0xff]
        %v665 = vld [vmem:[#allocation8 + $0x48] sm:$0xff]
        %v666 = vld [vmem:[#allocation8 + $0x50] sm:$0xff]
        %v667 = vld [vmem:[#allocation8 + $0x58] sm:$0xff]
        %v668 = vld [vmem:[#allocation8 + $0x60] sm:$0xff]
        %v669 = vld [vmem:[#allocation8 + $0x68] sm:$0xff]
        %v670 = vld [vmem:[#allocation8 + $0x70] sm:$0xff]
        %v671 = vld [vmem:[#allocation8 + $0x78] sm:$0xff]
        %672 = vmatprep.subr.mxu0 0.0
        %673 = vmatpush1.msra.mxu0 %v671
        %674 = vmatprep.subr.mxu0 0.0
        %675 = vmatpush1.msra.mxu0 %v670
        %676 = vmatprep.subr.mxu0 0.0
        %677 = vmatpush1.msra.mxu0 %v669
        %678 = vmatprep.subr.mxu0 0.0
        %679 = vmatpush1.msra.mxu0 %v668
        %680 = vmatprep.subr.mxu0 0.0
        %681 = vmatpush1.msra.mxu0 %v667
        %682 = vmatprep.subr.mxu0 0.0
        %683 = vmatpush1.msra.mxu0 %v666
        %684 = vmatprep.subr.mxu0 0.0
        %685 = vmatpush1.msra.mxu0 %v665
        %686 = vmatprep.subr.mxu0 0.0
        %687 = vmatpush1.msra.mxu0 %v664
        %688 = vmatprep.subr.mxu0 0.0
        %689 = vmatpush1.msra.mxu0 %v663
        %690 = vmatprep.subr.mxu0 0.0
        %691 = vmatpush1.msra.mxu0 %v662
        %692 = vmatprep.subr.mxu0 0.0
        %693 = vmatpush1.msra.mxu0 %v661
        %694 = vmatprep.subr.mxu0 0.0
        %695 = vmatpush1.msra.mxu0 %v660
        %696 = vmatprep.subr.mxu0 0.0
        %697 = vmatpush1.msra.mxu0 %v659
        %698 = vmatprep.subr.mxu0 0.0
        %699 = vmatpush1.msra.mxu0 %v658
        %700 = vmatprep.subr.mxu0 0.0
        %701 = vmatpush1.msra.mxu0 %v657
        %702 = vmatprep.subr.mxu0 0.0
        %703 = vmatpush1.msra.mxu0 %v656
        %704 = vmatprep.subr.mxu0 0.0
        %705 = vmatpush2.msra.mxu0 0.0
        %706 = vmatprep.subr.mxu0 0.0
        %707 = vmatpush2.msra.mxu0 0.0
        %708 = vmatprep.subr.mxu0 0.0
        %709 = vmatpush2.msra.mxu0 0.0
        %710 = vmatprep.subr.mxu0 0.0
        %711 = vmatpush2.msra.mxu0 0.0
        %712 = vmatprep.subr.mxu0 0.0
        %713 = vmatpush2.msra.mxu0 0.0
        %714 = vmatprep.subr.mxu0 0.0
        %715 = vmatpush2.msra.mxu0 0.0
        %716 = vmatprep.subr.mxu0 0.0
        %717 = vmatpush2.msra.mxu0 0.0
        %718 = vmatprep.subr.mxu0 0.0
        %719 = vmatpush2.msra.mxu0 0.0
        %720 = vmatprep.subr.mxu0 0.0
        %721 = vmatpush2.msra.mxu0 0.0
        %722 = vmatprep.subr.mxu0 0.0
        %723 = vmatpush2.msra.mxu0 0.0
        %724 = vmatprep.subr.mxu0 0.0
        %725 = vmatpush2.msra.mxu0 0.0
        %726 = vmatprep.subr.mxu0 0.0
        %727 = vmatpush2.msra.mxu0 0.0
        %728 = vmatprep.subr.mxu0 0.0
        %729 = vmatpush2.msra.mxu0 0.0
        %730 = vmatprep.subr.mxu0 0.0
        %731 = vmatpush2.msra.mxu0 0.0
        %732 = vmatprep.subr.mxu0 0.0
        %733 = vmatpush2.msra.mxu0 0.0
        %734 = vmatprep.subr.mxu0 0.0
        %735 = vmatpush2.msra.mxu0 0.0
        %736 = vmatprep.mubr.f32.mxu0 0.0
        %737 = vmatmul.mubr.f32.gmra.mxu0 %v640
        %v738 = vpop.f32.mrf.mxu0
        %v739 = vadd.f32 0.0, %v738
        %v740 = vpop.f32.mrf.mxu0
        %741 = vmatprep.mubr.f32.mxu0 0.0
        %742 = vmatmul.mubr.f32.gmra.mxu0 %v641
        %v743 = vpop.f32.mrf.mxu0
        %v744 = vadd.f32 0.0, %v743
        %v745 = vpop.f32.mrf.mxu0
        %746 = vmatprep.mubr.f32.mxu0 0.0
        %747 = vmatmul.mubr.f32.gmra.mxu0 %v642
        %v748 = vpop.f32.mrf.mxu0
        %v749 = vadd.f32 0.0, %v748
        %v750 = vpop.f32.mrf.mxu0
        %751 = vmatprep.mubr.f32.mxu0 0.0
        %752 = vmatmul.mubr.f32.gmra.mxu0 %v643
        %v753 = vpop.f32.mrf.mxu0
        %v754 = vadd.f32 0.0, %v753
        %v755 = vpop.f32.mrf.mxu0
        %756 = vmatprep.mubr.f32.mxu0 0.0
        %757 = vmatmul.mubr.f32.gmra.mxu0 %v644
        %v758 = vpop.f32.mrf.mxu0
        %v759 = vadd.f32 0.0, %v758
        %v760 = vpop.f32.mrf.mxu0
        %761 = vmatprep.mubr.f32.mxu0 0.0
        %762 = vmatmul.mubr.f32.gmra.mxu0 %v645
        %v763 = vpop.f32.mrf.mxu0
        %v764 = vadd.f32 0.0, %v763
        %v765 = vpop.f32.mrf.mxu0
        %766 = vmatprep.mubr.f32.mxu0 0.0
        %767 = vmatmul.mubr.f32.gmra.mxu0 %v646
        %v768 = vpop.f32.mrf.mxu0
        %v769 = vadd.f32 0.0, %v768
        %v770 = vpop.f32.mrf.mxu0
        %771 = vmatprep.mubr.f32.mxu0 0.0
        %772 = vmatmul.mubr.f32.gmra.mxu0 %v647
        %v773 = vpop.f32.mrf.mxu0
        %v774 = vadd.f32 0.0, %v773
        %v775 = vpop.f32.mrf.mxu0
        %776 = vdwg.mxu0
        %v777 = vadd.f32 %v648, %v739
        %v778 = vadd.f32 %v649, %v744
        %v779 = vadd.f32 %v650, %v749
        %v780 = vadd.f32 %v651, %v754
        %v781 = vadd.f32 %v652, %v759
        %v782 = vadd.f32 %v653, %v764
        %v783 = vadd.f32 %v654, %v769
        %v784 = vadd.f32 %v655, %v774
        %785 = vst [vmem:[#allocation2] sm:$0xff] %v777
        %786 = vst [vmem:[#allocation2 + $0x8] sm:$0xff] %v778
        %787 = vst [vmem:[#allocation2 + $0x10] sm:$0xff] %v779
        %788 = vst [vmem:[#allocation2 + $0x18] sm:$0xff] %v780
        %789 = vst [vmem:[#allocation2 + $0x20] sm:$0xff] %v781
        %790 = vst [vmem:[#allocation2 + $0x28] sm:$0xff] %v782
        %791 = vst [vmem:[#allocation2 + $0x30] sm:$0xff] %v783
        %792 = vst [vmem:[#allocation2 + $0x38] sm:$0xff] %v784
        // Predicated region
        $region57: #{tpu_custom_call.1} parent=39 // pred_check
          %p793 = pneg %p316
        $region58: #{tpu_custom_call.1} parent=39 // pred_check_branch
          %795 = sbr.rel (%p793) target = $region60
        $region59: #{tpu_custom_call.1} parent=39 // pred_region
          %v796 = vld [vmem:[#allocation2] sm:$0xff]
          %v797 = vld [vmem:[#allocation2 + $0x8] sm:$0xff]
          %v798 = vld [vmem:[#allocation2 + $0x10] sm:$0xff]
          %v799 = vld [vmem:[#allocation2 + $0x18] sm:$0xff]
          %v800 = vld [vmem:[#allocation2 + $0x20] sm:$0xff]
          %v801 = vld [vmem:[#allocation2 + $0x28] sm:$0xff]
          %v802 = vld [vmem:[#allocation2 + $0x30] sm:$0xff]
          %v803 = vld [vmem:[#allocation2 + $0x38] sm:$0xff]
          %v804 = vld [vmem:[%s4] sm:$0x1]
          %v806 = vlaneseq
          %v807 = vshrl.u32 %v806, 7
          %v808 = vsub.s32 0, %v807
          %v809 = vrot.slane %v804, %v808
          %v811 = vadd.f32 %v796, %v809
          %v812 = vadd.f32 %v797, %v809
          %v813 = vadd.f32 %v798, %v809
          %v814 = vadd.f32 %v799, %v809
          %v815 = vadd.f32 %v800, %v809
          %v816 = vadd.f32 %v801, %v809
          %v817 = vadd.f32 %v802, %v809
          %v818 = vadd.f32 %v803, %v809
          %819 = vst [vmem:[%s309] sm:$0xff] %v811
          %820 = vst [vmem:[%s309 + $0x8] sm:$0xff] %v812
          %821 = vst [vmem:[%s309 + $0x10] sm:$0xff] %v813
          %822 = vst [vmem:[%s309 + $0x18] sm:$0xff] %v814
          %823 = vst [vmem:[%s309 + $0x20] sm:$0xff] %v815
          %824 = vst [vmem:[%s309 + $0x28] sm:$0xff] %v816
          %825 = vst [vmem:[%s309 + $0x30] sm:$0xff] %v817
          %826 = vst [vmem:[%s309 + $0x38] sm:$0xff] %v818
        $region60: #{tpu_custom_call.1} parent=39 // pred_fallthru
          _
        %s827 = sand.u32 %s168, 1
        %s828 = scalar_lea.sflag [#allocation5], %s827
        %s829 = sand.u32 %s168, 1
        %s830 = smul.addr %s829, 64
        %s831 = scalar_lea.vmem [#allocation9], %s830
        // Predicated region
        $region61: #{tpu_custom_call.1} parent=39 // pred_check
          %p832 = pneg %p178
        $region62: #{tpu_custom_call.1} parent=39 // pred_check_branch
          %834 = sbr.rel (%p832) target = $region64
        $region63: #{tpu_custom_call.1} parent=39 // pred_region
          %s835 = smul.u32 8, %s27
          %s837 = ssub.s32 1024, 1024
          %838 = vsyncadd %s828, %s837
          %s839 = smul.addr %s835, 128
          %s840 = scalar_lea.hbm %s5, %s839
          %s841 = sshll.u32 %s831, 4
          %s842 = int_to_ptr.vmem [resolvable:$true] %s841
          %847 = dma.vmem_to_hbm [thread:$0]  %s842, 1024, %s840, %s828, 128, 128, 8
        $region64: #{tpu_custom_call.1} parent=39 // pred_fallthru
          _
      $region40: #{tpu_custom_call.1} parent=5 // pred_fallthru
        _
      %p848 = scmp.le.s32.totalorder 2, %s18
      // Predicated region
      $region65: #{tpu_custom_call.1} parent=5 // pred_check
        %p849 = pneg %p848
      $region66: #{tpu_custom_call.1} parent=5 // pred_check_branch
        %851 = sbr.rel (%p849) target = $region68
      $region67: #{tpu_custom_call.1} parent=5 // pred_region
        %s852 = ssub.s32 %s18, 2
        // Predicated region
        $region69: #{tpu_custom_call.1} parent=67 // pred_check
          %p853 = pneg %p184
        $region70: #{tpu_custom_call.1} parent=67 // pred_check_branch
          %855 = sbr.rel (%p853) target = $region72
        $region71: #{tpu_custom_call.1} parent=67 // pred_region
          %s856 = sand.u32 %s169, 1
          %s857 = scalar_lea.sflag [#allocation5], %s856
          %s858 = sand.u32 %s169, 1
          %s859 = smul.addr %s858, 64
          %s860 = scalar_lea.vmem [#allocation9], %s859
          %861 = dma.done %s857, 1024
        $region72: #{tpu_custom_call.1} parent=67 // pred_fallthru
          _
      $region68: #{tpu_custom_call.1} parent=5 // pred_fallthru
        _
    $region6: #{tpu_custom_call.1} parent=1 // loop_footer
      %s22 = sadd.s32 1, %s18
    $region7: #{tpu_custom_call.1} parent=1 // loop_footer_branch
      %17 = sbr.rel target = $region3
    $region8: #{tpu_custom_call.1} parent=1 // loop_exit
      _
    %862 = vsyncpa [#allocation4], 1
    %s863 = scalar_lea.sflag [#allocation4], 1
    %864 = vsyncpa %s863, 1
    %865 = vsyncpa [#allocation7], 1
    %866 = vsyncpa [#allocation5], 1
    %s867 = scalar_lea.sflag [#allocation5], 1
    %868 = vsyncpa %s867, 1

</llo_original>
